<compile_context>
chip_gen: v6e
topology: v6e:2x2x1
jax: 0.10.0
libtpu: 0.0.40
codegen_flags: <defaults>
</compile_context>

<pallas_src>
import functools

import jax
import jax.numpy as jnp
from jax import lax
from jax.experimental import pallas as pl
from jax.experimental.pallas import tpu as pltpu


def _contrastive_loss_kernel(x1_ref, x2_ref, label_ref, out_ref, *,
                             margin, batch, tile_b):
    x1 = x1_ref[...].astype(jnp.float32)          # (TB, D)
    x2 = x2_ref[...].astype(jnp.float32)          # (TB, D)
    label = label_ref[...].astype(jnp.float32)    # (TB, 1)

    eps = jnp.float32(1e-8)  # F.cosine_similarity default eps

    dot = jnp.sum(x1 * x2, axis=1, keepdims=True)   # (TB, 1)
    s1 = jnp.sum(x1 * x1, axis=1, keepdims=True)    # (TB, 1)  squared norm
    s2 = jnp.sum(x2 * x2, axis=1, keepdims=True)    # (TB, 1)  squared norm

    # Current PyTorch clamps the product of squared norms by eps^2, then rsqrt.
    sim = dot * lax.rsqrt(jnp.maximum(s1 * s2, eps * eps))   # (TB, 1)

    m = jnp.float32(margin)
    # Labels are binary {0, 1}: one select replaces (1-l)*relu(.) + l*relu(.).
    loss = jnp.where(label > 0.5,
                     jnp.maximum(m - sim, 0.0),
                     jnp.maximum(sim - m, 0.0))              # (TB, 1)

    # Mask rows beyond the true batch size (padding tiles).
    row0 = pl.program_id(0) * tile_b
    local = lax.broadcasted_iota(jnp.int32, (tile_b, 1), 0)
    valid = (row0 + local) < batch
    loss = jnp.where(valid, loss, 0.0)

    # Lane-dense partial output: 128 identical copies of this tile's sum.
    out_ref[...] = jnp.full((1, 128), jnp.sum(loss), dtype=jnp.float32)


def _pick_tile_b(B, D, itemsize):
    """Pick a batch tile so 2 inputs x 2 pipeline buffers stay within ~24 MiB."""
    budget = 24 * 1024 * 1024
    per_row = 2 * 2 * D * itemsize          # two inputs, double-buffered
    tb = max(8, budget // max(per_row, 1))
    tb = int(min(tb, 1024))
    tb = max(8, (tb // 8) * 8)              # sublane multiple of 8
    b_pad8 = ((B + 7) // 8) * 8
    return min(tb, b_pad8)


def contrastive_loss(x1, x2, label, margin: float = 0.5):
    assert x1.shape == x2.shape and x1.ndim == 2
    B, D = x1.shape
    itemsize = jnp.dtype(x1.dtype).itemsize

    tb = _pick_tile_b(B, D, itemsize)
    g = (B + tb - 1) // tb
    b_pad = g * tb

    label2 = label.reshape(B, 1).astype(jnp.float32)
    if b_pad != B:
        pad = b_pad - B
        x1 = jnp.pad(x1, ((0, pad), (0, 0)))
        x2 = jnp.pad(x2, ((0, pad), (0, 0)))
        label2 = jnp.pad(label2, ((0, pad), (0, 0)))

    kernel = functools.partial(_contrastive_loss_kernel,
                               margin=margin, batch=B, tile_b=tb)

    partials = pl.pallas_call(
        kernel,
        out_shape=jax.ShapeDtypeStruct((g, 128), jnp.float32),
        grid=(g,),
        in_specs=[
            pl.BlockSpec((tb, D), lambda i: (i, 0)),
            pl.BlockSpec((tb, D), lambda i: (i, 0)),
            pl.BlockSpec((tb, 1), lambda i: (i, 0)),
        ],
        out_specs=pl.BlockSpec((1, 128), lambda i: (i, 0)),
        compiler_params=pltpu.CompilerParams(
            dimension_semantics=("parallel",),
            vmem_limit_bytes=48 * 1024 * 1024,
        ),
        cost_estimate=pl.CostEstimate(
            flops=6 * B * D,
            transcendentals=B,
            bytes_accessed=2 * b_pad * D * itemsize + b_pad * 4 + g * 128 * 4,
        ),
    )(x1, x2, label2)

    # Tiny final reduction in the wrapper: f32 sum of partials / true batch.
    return jnp.sum(partials[:, 0]) / jnp.float32(B)


def _reference(x1, x2, label, margin=0.5):
    eps = 1e-8
    dot = jnp.sum(x1 * x2, axis=1)
    s1 = jnp.sum(x1 * x1, axis=1)
    s2 = jnp.sum(x2 * x2, axis=1)
    sim = dot / jnp.sqrt(jnp.maximum(s1 * s2, eps * eps))
    loss = (1.0 - label) * jnp.maximum(sim - margin, 0.0) \
         + label * jnp.maximum(margin - sim, 0.0)
    return jnp.mean(loss)


if __name__ == "__main__":
    key = jax.random.PRNGKey(0)
    k1, k2, k3, k4, k5, k6 = jax.random.split(key, 6)

    # Case 1: tile-aligned batch.
    B, D = 8, 32
    x1 = jax.random.normal(k1, (B, D), dtype=jnp.float32)
    x2 = jax.random.normal(k2, (B, D), dtype=jnp.float32)
    label = jax.random.bernoulli(k3, p=0.5, shape=(B,)).astype(jnp.float32)

    out = jax.block_until_ready(contrastive_loss(x1, x2, label, margin=0.5))
    ref = _reference(x1, x2, label, margin=0.5)
    assert jnp.allclose(out, ref, atol=1e-5, rtol=1e-5), (out, ref)

    # Case 2: batch not a multiple of the tile (exercises padding + masking).
    B2, D2 = 13, 32
    y1 = jax.random.normal(k4, (B2, D2), dtype=jnp.float32)
    y2 = jax.random.normal(k5, (B2, D2), dtype=jnp.float32)
    lab2 = jax.random.bernoulli(k6, p=0.5, shape=(B2,)).astype(jnp.float32)

    out2 = jax.block_until_ready(contrastive_loss(y1, y2, lab2, margin=0.5))
    ref2 = _reference(y1, y2, lab2, margin=0.5)
    assert jnp.allclose(out2, ref2, atol=1e-5, rtol=1e-5), (out2, ref2)

    print("KERNEL_OK")
</pallas_src>

<mosaic_0001>
module attributes {stable_mosaic.version = 11 : i64} {
  func.func @_contrastive_loss_kernel(%arg0: i32, %arg1: memref<8x32xf32, #tpu.memory_space<vmem>>, %arg2: memref<8x32xf32, #tpu.memory_space<vmem>>, %arg3: memref<8x1xf32, #tpu.memory_space<vmem>>, %arg4: memref<1x128xf32, #tpu.memory_space<vmem>>) attributes {dimension_semantics = [#tpu.dimension_semantics<parallel>], iteration_bounds = array<i64: 1>, scalar_prefetch = 0 : i64, scratch_operands = 0 : i64, tpu.core_type = #tpu.core_type<tc>, window_params = [{transform_indices = @transform_0, window_bounds = array<i64: 8, 32>}, {transform_indices = @transform_1, window_bounds = array<i64: 8, 32>}, {transform_indices = @transform_2, window_bounds = array<i64: 8, 1>}, {transform_indices = @transform_3, window_bounds = array<i64: 1, 128>}]} {
    %c0 = arith.constant 0 : index
    %c0_0 = arith.constant 0 : index
    %0 = vector.load %arg1[%c0, %c0_0] : memref<8x32xf32, #tpu.memory_space<vmem>>, vector<8x32xf32>
    %c0_1 = arith.constant 0 : index
    %c0_2 = arith.constant 0 : index
    %1 = vector.load %arg2[%c0_1, %c0_2] : memref<8x32xf32, #tpu.memory_space<vmem>>, vector<8x32xf32>
    %c0_3 = arith.constant 0 : index
    %c0_4 = arith.constant 0 : index
    %2 = vector.load %arg3[%c0_3, %c0_4] : memref<8x1xf32, #tpu.memory_space<vmem>>, vector<8x1xf32>
    %3 = arith.mulf %0, %1 : vector<8x32xf32>
    %cst = arith.constant dense<0.000000e+00> : vector<8xf32>
    %4 = vector.multi_reduction <add>, %3, %cst [1] : vector<8x32xf32> to vector<8xf32>
    %5 = vector.shape_cast %4 : vector<8xf32> to vector<8x1xf32>
    %6 = arith.mulf %0, %0 : vector<8x32xf32>
    %cst_5 = arith.constant dense<0.000000e+00> : vector<8xf32>
    %7 = vector.multi_reduction <add>, %6, %cst_5 [1] : vector<8x32xf32> to vector<8xf32>
    %8 = vector.shape_cast %7 : vector<8xf32> to vector<8x1xf32>
    %9 = arith.mulf %1, %1 : vector<8x32xf32>
    %cst_6 = arith.constant dense<0.000000e+00> : vector<8xf32>
    %10 = vector.multi_reduction <add>, %9, %cst_6 [1] : vector<8x32xf32> to vector<8xf32>
    %11 = vector.shape_cast %10 : vector<8xf32> to vector<8x1xf32>
    %12 = arith.mulf %8, %11 : vector<8x1xf32>
    %cst_7 = arith.constant 9.99999993E-9 : f32
    %cst_8 = arith.constant 9.99999993E-9 : f32
    %13 = arith.mulf %cst_7, %cst_8 : f32
    %14 = vector.broadcast %13 : f32 to vector<8x1xf32>
    %15 = arith.maximumf %12, %14 : vector<8x1xf32>
    %16 = math.rsqrt %15 : vector<8x1xf32>
    %17 = arith.mulf %5, %16 : vector<8x1xf32>
    %cst_9 = arith.constant 5.000000e-01 : f32
    %18 = vector.broadcast %cst_9 : f32 to vector<8x1xf32>
    %19 = arith.cmpf ogt, %2, %18 : vector<8x1xf32>
    %cst_10 = arith.constant 5.000000e-01 : f32
    %20 = vector.broadcast %cst_10 : f32 to vector<8x1xf32>
    %21 = arith.subf %20, %17 : vector<8x1xf32>
    %cst_11 = arith.constant 0.000000e+00 : f32
    %22 = vector.broadcast %cst_11 : f32 to vector<8x1xf32>
    %23 = arith.maximumf %21, %22 : vector<8x1xf32>
    %cst_12 = arith.constant 5.000000e-01 : f32
    %24 = vector.broadcast %cst_12 : f32 to vector<8x1xf32>
    %25 = arith.subf %17, %24 : vector<8x1xf32>
    %cst_13 = arith.constant 0.000000e+00 : f32
    %26 = vector.broadcast %cst_13 : f32 to vector<8x1xf32>
    %27 = arith.maximumf %25, %26 : vector<8x1xf32>
    %28 = arith.select %19, %23, %27 : vector<8x1xi1>, vector<8x1xf32>
    %c8_i32 = arith.constant 8 : i32
    %29 = arith.muli %arg0, %c8_i32 : i32
    %30 = tpu.iota {dimensions = array<i32: 0>} : vector<8x1xi32>
    %31 = vector.broadcast %29 : i32 to vector<8x1xi32>
    %32 = arith.addi %31, %30 : vector<8x1xi32>
    %c8_i32_14 = arith.constant 8 : i32
    %33 = vector.broadcast %c8_i32_14 : i32 to vector<8x1xi32>
    %34 = arith.cmpi slt, %32, %33 : vector<8x1xi32>
    %cst_15 = arith.constant 0.000000e+00 : f32
    %35 = vector.broadcast %cst_15 : f32 to vector<8x1xf32>
    %36 = arith.select %34, %28, %35 : vector<8x1xi1>, vector<8x1xf32>
    %37 = vector.shape_cast %36 : vector<8x1xf32> to vector<1x8x1xf32>
    %cst_16 = arith.constant dense<0.000000e+00> : vector<1xf32>
    %38 = vector.multi_reduction <add>, %37, %cst_16 [1, 2] : vector<1x8x1xf32> to vector<1xf32>
    %39 = vector.shape_cast %38 : vector<1xf32> to vector<1x1x1xf32>
    %40 = vector.extract %39[0, 0, 0] : f32 from vector<1x1x1xf32>
    %41 = vector.broadcast %40 : f32 to vector<1x128xf32>
    %c0_17 = arith.constant 0 : index
    %c0_18 = arith.constant 0 : index
    %42 = vector.load %arg4[%c0_17, %c0_18] : memref<1x128xf32, #tpu.memory_space<vmem>>, vector<1x128xf32>
    tpu.vector_store %arg4[%c0_17, %c0_18], %41 {strides = array<i32>} : memref<1x128xf32, #tpu.memory_space<vmem>>, vector<1x128xf32>,
    return
  }
  func.func @transform_0(%arg0: i32) -> (i32, i32) {
    %c0_i32 = arith.constant 0 : i32
    %c0_i32_0 = arith.constant 0 : i32
    return %arg0, %c0_i32 : i32, i32
  }
  func.func @transform_1(%arg0: i32) -> (i32, i32) {
    %c0_i32 = arith.constant 0 : i32
    %c0_i32_0 = arith.constant 0 : i32
    return %arg0, %c0_i32 : i32, i32
  }
  func.func @transform_2(%arg0: i32) -> (i32, i32) {
    %c0_i32 = arith.constant 0 : i32
    %c0_i32_0 = arith.constant 0 : i32
    return %arg0, %c0_i32 : i32, i32
  }
  func.func @transform_3(%arg0: i32) -> (i32, i32) {
    %c0_i32 = arith.constant 0 : i32
    %c0_i32_0 = arith.constant 0 : i32
    return %arg0, %c0_i32 : i32, i32
  }
}

</mosaic_0001>

<llo_original>
// kernel: tpu_custom_call.1
$region0: #{tpu_custom_call.1}
  #allocation0 [shape = 'u32[]', space=smem, size = 0x4, offset = 0x4, fixed_abs, tag = 'smem constant byte address 0x4 - core index']
  #allocation1 [shape = 'u32[144,128]{1,0:T(1,128)}', space=vmem, size = 0x12000, scoped, tag = 'internal scratch']
  %s0 = inlined_call_operand.vmem [shape: f32[8,32], index: 0, kind: input, shape index: {}]
  %s1 = inlined_call_operand.hbm [shape: f32[8,32], index: 1, kind: input, shape index: {}]
  %s2 = inlined_call_operand.vmem [shape: f32[8,1], index: 2, kind: input, shape index: {}]
  %s3 = inlined_call_operand.hbm [shape: f32[1,128], index: 3, kind: output, shape index: {}]
  %s4 = sld [smem:[#allocation0]]
  $region26: #{tpu_custom_call.1} parent=0
    _
  %s6 = ssub.s32 1, %s4
  %s7 = scalar_select 0, %s6, %s4
  $region1: #{tpu_custom_call.1} parent=0
    #allocation2 [shape = 'u8[4096]{0}', space=vmem, size = 0x1000, scoped, tag = 'input window, operand 1, single buffered']
    #allocation3 [shape = 's32[1]{0}', space=sflag, size = 0x4, scoped, tag = 'scoped memory for tpu_custom_call.1']
    #allocation4 [shape = 's32[1]{0}', space=sflag, size = 0x4, scoped, tag = 'scoped memory for tpu_custom_call.1']
    #allocation5 [shape = 'u8[512]{0}', space=vmem, size = 0x400, scoped, tag = 'output window, operand 0, single buffered']
    %8 = vsyncpa [#allocation3], 0
    %9 = vsyncpa [#allocation4], 0
    // Predicated region
    $region2: #{tpu_custom_call.1} parent=1 // pred_check
      _
    $region3: #{tpu_custom_call.1} parent=1 // pred_check_branch
      %11 = sbr.rel (0) target = $region5
    $region4: #{tpu_custom_call.1} parent=1 // pred_region
      _
    $region5: #{tpu_custom_call.1} parent=1 // pred_fallthru
      _
    // Predicated region
    $region6: #{tpu_custom_call.1} parent=1 // pred_check
      _
    $region7: #{tpu_custom_call.1} parent=1 // pred_check_branch
      %13 = sbr.rel (0) target = $region9
    $region8: #{tpu_custom_call.1} parent=1 // pred_region
      %s15 = ssub.s32 128, 128
      %16 = vsyncadd [#allocation3], %s15
      %s18 = sshll.u32 [#allocation2], 4
      %s19 = int_to_ptr.vmem [resolvable:$true] %s18
      %21 = dma.hbm_to_vmem [thread:$0]  %s1, 128, %s19, [#allocation3]
    $region9: #{tpu_custom_call.1} parent=1 // pred_fallthru
      _
    // Predicated region
    $region10: #{tpu_custom_call.1} parent=1 // pred_check
      _
    $region11: #{tpu_custom_call.1} parent=1 // pred_check_branch
      %23 = sbr.rel (0) target = $region13
    $region12: #{tpu_custom_call.1} parent=1 // pred_region
      _
    $region13: #{tpu_custom_call.1} parent=1 // pred_fallthru
      _
    // Predicated region
    $region14: #{tpu_custom_call.1} parent=1 // pred_check
      _
    $region15: #{tpu_custom_call.1} parent=1 // pred_check_branch
      %25 = sbr.rel (0) target = $region17
    $region16: #{tpu_custom_call.1} parent=1 // pred_region
      %26 = dma.done [#allocation3], 128
    $region17: #{tpu_custom_call.1} parent=1 // pred_fallthru
      _
    %v27 = vld [vmem:[%s0] sm:$0xff]
    %v28 = vld [vmem:[#allocation2] sm:$0xff]
    %v29 = vld [vmem:[%s2] sm:$0xff]
    %v30 = vmul.f32 %v27, %v28
    %vm31 = vcmask 261120
    %v32 = vsel %vm31, %v30, 0.0
    %33 = vadd.xlane.f32.xlu0 %v32
    %v34 = vpop.xlane.xlu0 %33
    %v35 = vmul.f32 %v27, %v27
    %v36 = vsel %vm31, %v35, 0.0
    %37 = vadd.xlane.f32.xlu0 %v36
    %v38 = vpop.xlane.xlu0 %37
    %v39 = vmul.f32 %v28, %v28
    %v40 = vsel %vm31, %v39, 0.0
    %41 = vadd.xlane.f32.xlu0 %v40
    %v42 = vpop.xlane.xlu0 %41
    %v43 = vmul.f32 %v38, %v42
    %v44 = vmax.f32 %v43, 1e-16
    %v45 = vrsqrt.pop %v44
    %v46 = vmul.f32 %v34, %v45
    %vm47 = vcmp.gt.f32.partialorder %v29, 0.5
    %v48 = vsub.f32 0.5, %v46
    %v49 = vmax.f32 %v48, 0.0
    %v50 = vsub.f32 %v46, 0.5
    %v51 = vmax.f32 %v50, 0.0
    %v52 = vsel %vm47, %v49, %v51
    %s53 = smul.u32 0, 8
    %v54 = vlaneseq
    %v55 = vshrl.u32 %v54, 7
    %v56 = vstv %s53
    %v57 = vadd.s32 %v56, %v55
    %vm58 = vcmp.lt.s32.totalorder %v57, 8
    %v59 = vsel %vm58, %v52, 0.0
    %vm60 = vcmask 7168
    %v61 = vsel %vm60, %v59, 0.0
    %62 = vadd.xlane.f32.xlu0 %v61
    %v63 = vpop.xlane.xlu0 %62
    %v64 = vrot.slane %v63, 4
    %v65 = vadd.f32 %v63, %v64
    %v66 = vrot.slane %v65, 2
    %v67 = vadd.f32 %v65, %v66
    %v68 = vrot.slane %v67, 1
    %v69 = vadd.f32 %v67, %v68
    %s70 = vtos %v69
    %v71 = vstv %s70
    %72 = vst [vmem:[#allocation5] sm:$0x1] %v71
    // Predicated region
    $region18: #{tpu_custom_call.1} parent=1 // pred_check
      _
    $region19: #{tpu_custom_call.1} parent=1 // pred_check_branch
      %74 = sbr.rel (0) target = $region21
    $region20: #{tpu_custom_call.1} parent=1 // pred_region
      %s76 = ssub.s32 16, 16
      %77 = vsyncadd [#allocation4], %s76
      %s79 = sshll.u32 [#allocation5], 4
      %s80 = int_to_ptr.vmem [resolvable:$true] %s79
      %82 = dma.vmem_to_hbm [thread:$0]  %s80, 16, %s3, [#allocation4]
    $region21: #{tpu_custom_call.1} parent=1 // pred_fallthru
      _
    // Predicated region
    $region22: #{tpu_custom_call.1} parent=1 // pred_check
      _
    $region23: #{tpu_custom_call.1} parent=1 // pred_check_branch
      %84 = sbr.rel (0) target = $region25
    $region24: #{tpu_custom_call.1} parent=1 // pred_region
      %85 = dma.done [#allocation4], 16
    $region25: #{tpu_custom_call.1} parent=1 // pred_fallthru
      _
    %86 = vsyncpa [#allocation3], 1
    %87 = vsyncpa [#allocation4], 1

</llo_original>
